<compile_context>
chip_gen: v5e
topology: v5e:2x2
jax: 0.10.0
libtpu: 0.0.40
codegen_flags: <defaults>
</compile_context>

<pallas_src>
import jax
import jax.numpy as jnp
from jax.experimental import pallas as pl
from jax.experimental.pallas import tpu as pltpu


def _cross_translation_kernel(x1_ref, x2_ref, w12_ref, b12_ref, w3h_ref, b3_ref,
                              out_ref, j2_ref, j3_ref):
    x1 = x1_ref[0]            # (C, tile_hw)
    x2 = x2_ref[0]            # (C, tile_hw)
    w12 = w12_ref[...]        # (C, C)   rows = [W1 ; W2]
    b12 = b12_ref[...]        # (C, 1)
    w3h = w3h_ref[...]        # (C, C)   already scaled by 0.5
    b3 = b3_ref[...]          # (C, 1)

    # joint_2 = relu([W1;W2] @ x1 + [b1;b2]) ; joint_3 likewise on x2.
    j2 = jnp.maximum(jnp.dot(w12, x1, preferred_element_type=jnp.float32) + b12, 0.0)
    j3 = jnp.maximum(jnp.dot(w12, x2, preferred_element_type=jnp.float32) + b12, 0.0)

    # joint_1 = (joint_2 + joint_3) / 2; the 0.5 is folded into w3h.
    s = j2 + j3
    out = jnp.maximum(jnp.dot(w3h, s, preferred_element_type=jnp.float32) + b3, 0.0)

    out_ref[0] = out
    j2_ref[0] = j2
    j3_ref[0] = j3


def _pick_tile(hw, c, vmem_budget_bytes=16 * 1024 * 1024):
    """Largest multiple of 128 dividing hw whose pipelined footprint fits the budget."""
    # ~2 pipeline buffers x (2 inputs + 3 outputs) x (c x tile) x 4 bytes
    cap = max(128, vmem_budget_bytes // (2 * 5 * c * 4))
    cap = (cap // 128) * 128
    best = None
    t = 128
    limit = min(hw, cap)
    while t <= limit:
        if hw % t == 0:
            best = t
        t += 128
    # Fallback: full spatial extent (always a legal block — equals full dim).
    return best if best is not None else hw


def cross_translation_pallas(m1_nchw, m2_nchw, params):
    """m1/m2: (N, C, H, W) float32.  Returns (m1_m2_feature, joint_2, joint_3) in NCHW."""
    w1, b1, w2, b2, w3, b3 = params
    N, C, H, W = m1_nchw.shape
    Ch = C // 2
    HW = H * W

    tile_hw = _pick_tile(HW, C)
    grid = (N, HW // tile_hw)

    # (N, C, H, W) -> (N, C, H*W): pure reshape, no data movement.
    x1 = m1_nchw.reshape(N, C, HW)
    x2 = m2_nchw.reshape(N, C, HW)

    # Conv2d weight (C_out, C_in, 1, 1) -> (C_out, C_in) acting on the left.
    W12 = jnp.concatenate([w1.reshape(Ch, C), w2.reshape(Ch, C)], axis=0)  # (C, C)
    B12 = jnp.concatenate([b1, b2]).reshape(C, 1)
    W3h = w3.reshape(C, C) * 0.5          # fold the /2 averaging into the weight
    B3 = b3.reshape(C, 1)

    row_spec = pl.BlockSpec((1, C, tile_hw), lambda n, s: (n, 0, s))
    full = lambda shape: pl.BlockSpec(shape, lambda n, s: (0, 0))

    out, j2, j3 = pl.pallas_call(
        _cross_translation_kernel,
        out_shape=(
            jax.ShapeDtypeStruct((N, C, HW), jnp.float32),
            jax.ShapeDtypeStruct((N, C, HW), jnp.float32),
            jax.ShapeDtypeStruct((N, C, HW), jnp.float32),
        ),
        grid_spec=pltpu.PrefetchScalarGridSpec(
            num_scalar_prefetch=0,
            grid=grid,
            in_specs=[
                row_spec, row_spec,
                full((C, C)), full((C, 1)),
                full((C, C)), full((C, 1)),
            ],
            out_specs=[row_spec, row_spec, row_spec],
        ),
        compiler_params=pltpu.CompilerParams(
            dimension_semantics=("parallel", "parallel"),
            vmem_limit_bytes=48 * 1024 * 1024),
    )(x1, x2, W12, B12, W3h, B3)

    def to_nchw(r):  # (N, C, H*W) -> (N, C, H, W): pure reshape.
        return r.reshape(N, C, H, W)

    return to_nchw(out), to_nchw(j2), to_nchw(j3)


def cross_translation_ref(m1, m2, params):
    """Pure-JAX reference matching the PyTorch forward exactly (NCHW)."""
    w1, b1, w2, b2, w3, b3 = params

    def conv1x1(x, w, b):
        y = jax.lax.conv_general_dilated(
            x, w, window_strides=(1, 1), padding="VALID",
            dimension_numbers=("NCHW", "OIHW", "NCHW"))
        return jnp.maximum(y + b.reshape(1, -1, 1, 1), 0.0)

    m1_m1 = conv1x1(m1, w1, b1)
    m2_m2 = conv1x1(m2, w2, b2)
    m2_m1 = conv1x1(m2, w1, b1)
    m1_m2 = conv1x1(m1, w2, b2)
    joint_1 = jnp.concatenate([(m1_m1 + m2_m1) / 2, (m2_m2 + m1_m2) / 2], axis=1)
    joint_2 = jnp.concatenate([m1_m1, m1_m2], axis=1)
    joint_3 = jnp.concatenate([m2_m1, m2_m2], axis=1)
    m1_m2_feature = conv1x1(joint_1, w3, b3)
    return m1_m2_feature, joint_2, joint_3


if __name__ == "__main__":
    N, C, H, W = 2, 8, 16, 16   # channels_in = 8 -> half = 4
    Ch = C // 2

    key = jax.random.PRNGKey(0)
    ks = jax.random.split(key, 8)
    # Deterministic synthetic parameters (Conv2d weight layout: (C_out, C_in, 1, 1))
    w1 = jax.random.normal(ks[0], (Ch, C, 1, 1), jnp.float32) * 0.1
    b1 = jax.random.normal(ks[1], (Ch,), jnp.float32) * 0.1
    w2 = jax.random.normal(ks[2], (Ch, C, 1, 1), jnp.float32) * 0.1
    b2 = jax.random.normal(ks[3], (Ch,), jnp.float32) * 0.1
    w3 = jax.random.normal(ks[4], (C, C, 1, 1), jnp.float32) * 0.1
    b3 = jax.random.normal(ks[5], (C,), jnp.float32) * 0.1
    params = (w1, b1, w2, b2, w3, b3)

    m1 = jax.random.normal(ks[6], (N, C, H, W), jnp.float32)
    m2 = jax.random.normal(ks[7], (N, C, H, W), jnp.float32)

    out = cross_translation_pallas(m1, m2, params)
    out = jax.block_until_ready(out)

    ref = cross_translation_ref(m1, m2, params)
    for a, b in zip(out, ref):
        assert a.shape == b.shape, (a.shape, b.shape)
        assert jnp.allclose(a, b, atol=1e-5, rtol=1e-5), float(jnp.max(jnp.abs(a - b)))

    print("KERNEL_OK")
</pallas_src>

<mosaic_0001>
module attributes {stable_mosaic.version = 11 : i64} {
  func.func @_cross_translation_kernel(%arg0: i32, %arg1: i32, %arg2: memref<1x8x256xf32, #tpu.memory_space<vmem>>, %arg3: memref<1x8x256xf32, #tpu.memory_space<vmem>>, %arg4: memref<8x8xf32, #tpu.memory_space<vmem>>, %arg5: memref<8x1xf32, #tpu.memory_space<vmem>>, %arg6: memref<8x8xf32, #tpu.memory_space<vmem>>, %arg7: memref<8x1xf32, #tpu.memory_space<vmem>>, %arg8: memref<1x8x256xf32, #tpu.memory_space<vmem>>, %arg9: memref<1x8x256xf32, #tpu.memory_space<vmem>>, %arg10: memref<1x8x256xf32, #tpu.memory_space<vmem>>) attributes {dimension_semantics = [#tpu.dimension_semantics<parallel>, #tpu.dimension_semantics<parallel>], iteration_bounds = array<i64: 2, 1>, scalar_prefetch = 0 : i64, scratch_operands = 0 : i64, tpu.core_type = #tpu.core_type<tc>, window_params = [{transform_indices = @transform_0, window_bounds = array<i64: 1, 8, 256>}, {transform_indices = @transform_1, window_bounds = array<i64: 1, 8, 256>}, {pipeline_mode = #tpu.pipeline_mode<synchronous>, transform_indices = @transform_2, window_bounds = array<i64: 8, 8>}, {pipeline_mode = #tpu.pipeline_mode<synchronous>, transform_indices = @transform_3, window_bounds = array<i64: 8, 1>}, {pipeline_mode = #tpu.pipeline_mode<synchronous>, transform_indices = @transform_4, window_bounds = array<i64: 8, 8>}, {pipeline_mode = #tpu.pipeline_mode<synchronous>, transform_indices = @transform_5, window_bounds = array<i64: 8, 1>}, {transform_indices = @transform_6, window_bounds = array<i64: 1, 8, 256>}, {transform_indices = @transform_7, window_bounds = array<i64: 1, 8, 256>}, {transform_indices = @transform_8, window_bounds = array<i64: 1, 8, 256>}]} {
    %c0 = arith.constant 0 : index
    %c0_0 = arith.constant 0 : index
    %c0_1 = arith.constant 0 : index
    %0 = vector.load %arg2[%c0, %c0_0, %c0_1] : memref<1x8x256xf32, #tpu.memory_space<vmem>>, vector<1x8x256xf32>
    %1 = vector.shape_cast %0 : vector<1x8x256xf32> to vector<8x256xf32>
    %c0_2 = arith.constant 0 : index
    %c0_3 = arith.constant 0 : index
    %c0_4 = arith.constant 0 : index
    %2 = vector.load %arg3[%c0_2, %c0_3, %c0_4] : memref<1x8x256xf32, #tpu.memory_space<vmem>>, vector<1x8x256xf32>
    %3 = vector.shape_cast %2 : vector<1x8x256xf32> to vector<8x256xf32>
    %c0_5 = arith.constant 0 : index
    %c0_6 = arith.constant 0 : index
    %4 = vector.load %arg4[%c0_5, %c0_6] : memref<8x8xf32, #tpu.memory_space<vmem>>, vector<8x8xf32>
    %c0_7 = arith.constant 0 : index
    %c0_8 = arith.constant 0 : index
    %5 = vector.load %arg5[%c0_7, %c0_8] : memref<8x1xf32, #tpu.memory_space<vmem>>, vector<8x1xf32>
    %c0_9 = arith.constant 0 : index
    %c0_10 = arith.constant 0 : index
    %6 = vector.load %arg6[%c0_9, %c0_10] : memref<8x8xf32, #tpu.memory_space<vmem>>, vector<8x8xf32>
    %c0_11 = arith.constant 0 : index
    %c0_12 = arith.constant 0 : index
    %7 = vector.load %arg7[%c0_11, %c0_12] : memref<8x1xf32, #tpu.memory_space<vmem>>, vector<8x1xf32>
    %cst = arith.constant dense<0.000000e+00> : vector<8x256xf32>
    %8 = tpu.matmul %4, %1, %cst {dimension_numbers = #tpu.dot_dimension_numbers<[1], [0], [0], [1], [0, 0, 1, 1], [], []>} : vector<8x8xf32>, vector<8x256xf32>, vector<8x256xf32> -> vector<8x256xf32>
    %9 = vector.broadcast %5 : vector<8x1xf32> to vector<8x256xf32>
    %10 = arith.addf %8, %9 : vector<8x256xf32>
    %cst_13 = arith.constant 0.000000e+00 : f32
    %11 = vector.broadcast %cst_13 : f32 to vector<8x256xf32>
    %12 = arith.maximumf %10, %11 : vector<8x256xf32>
    %cst_14 = arith.constant dense<0.000000e+00> : vector<8x256xf32>
    %13 = tpu.matmul %4, %3, %cst_14 {dimension_numbers = #tpu.dot_dimension_numbers<[1], [0], [0], [1], [0, 0, 1, 1], [], []>} : vector<8x8xf32>, vector<8x256xf32>, vector<8x256xf32> -> vector<8x256xf32>
    %14 = vector.broadcast %5 : vector<8x1xf32> to vector<8x256xf32>
    %15 = arith.addf %13, %14 : vector<8x256xf32>
    %cst_15 = arith.constant 0.000000e+00 : f32
    %16 = vector.broadcast %cst_15 : f32 to vector<8x256xf32>
    %17 = arith.maximumf %15, %16 : vector<8x256xf32>
    %18 = arith.addf %12, %17 : vector<8x256xf32>
    %cst_16 = arith.constant dense<0.000000e+00> : vector<8x256xf32>
    %19 = tpu.matmul %6, %18, %cst_16 {dimension_numbers = #tpu.dot_dimension_numbers<[1], [0], [0], [1], [0, 0, 1, 1], [], []>} : vector<8x8xf32>, vector<8x256xf32>, vector<8x256xf32> -> vector<8x256xf32>
    %20 = vector.broadcast %7 : vector<8x1xf32> to vector<8x256xf32>
    %21 = arith.addf %19, %20 : vector<8x256xf32>
    %cst_17 = arith.constant 0.000000e+00 : f32
    %22 = vector.broadcast %cst_17 : f32 to vector<8x256xf32>
    %23 = arith.maximumf %21, %22 : vector<8x256xf32>
    %c0_18 = arith.constant 0 : index
    %c0_19 = arith.constant 0 : index
    %c0_20 = arith.constant 0 : index
    %24 = vector.load %arg8[%c0_18, %c0_19, %c0_20] : memref<1x8x256xf32, #tpu.memory_space<vmem>>, vector<1x8x256xf32>
    %25 = vector.shape_cast %24 : vector<1x8x256xf32> to vector<8x256xf32>
    %26 = vector.shape_cast %23 : vector<8x256xf32> to vector<1x8x256xf32>
    tpu.vector_store %arg8[%c0_18, %c0_19, %c0_20], %26 {strides = array<i32>} : memref<1x8x256xf32, #tpu.memory_space<vmem>>, vector<1x8x256xf32>,
    %c0_21 = arith.constant 0 : index
    %c0_22 = arith.constant 0 : index
    %c0_23 = arith.constant 0 : index
    %27 = vector.load %arg9[%c0_21, %c0_22, %c0_23] : memref<1x8x256xf32, #tpu.memory_space<vmem>>, vector<1x8x256xf32>
    %28 = vector.shape_cast %27 : vector<1x8x256xf32> to vector<8x256xf32>
    %29 = vector.shape_cast %12 : vector<8x256xf32> to vector<1x8x256xf32>
    tpu.vector_store %arg9[%c0_21, %c0_22, %c0_23], %29 {strides = array<i32>} : memref<1x8x256xf32, #tpu.memory_space<vmem>>, vector<1x8x256xf32>,
    %c0_24 = arith.constant 0 : index
    %c0_25 = arith.constant 0 : index
    %c0_26 = arith.constant 0 : index
    %30 = vector.load %arg10[%c0_24, %c0_25, %c0_26] : memref<1x8x256xf32, #tpu.memory_space<vmem>>, vector<1x8x256xf32>
    %31 = vector.shape_cast %30 : vector<1x8x256xf32> to vector<8x256xf32>
    %32 = vector.shape_cast %17 : vector<8x256xf32> to vector<1x8x256xf32>
    tpu.vector_store %arg10[%c0_24, %c0_25, %c0_26], %32 {strides = array<i32>} : memref<1x8x256xf32, #tpu.memory_space<vmem>>, vector<1x8x256xf32>,
    return
  }
  func.func @transform_0(%arg0: i32, %arg1: i32) -> (i32, i32, i32) {
    %c0_i32 = arith.constant 0 : i32
    %c0_i32_0 = arith.constant 0 : i32
    return %arg0, %c0_i32, %arg1 : i32, i32, i32
  }
  func.func @transform_1(%arg0: i32, %arg1: i32) -> (i32, i32, i32) {
    %c0_i32 = arith.constant 0 : i32
    %c0_i32_0 = arith.constant 0 : i32
    return %arg0, %c0_i32, %arg1 : i32, i32, i32
  }
  func.func @transform_2(%arg0: i32, %arg1: i32) -> (i32, i32) {
    %c0_i32 = arith.constant 0 : i32
    %c0_i32_0 = arith.constant 0 : i32
    %c0_i32_1 = arith.constant 0 : i32
    return %c0_i32, %c0_i32_0 : i32, i32
  }
  func.func @transform_3(%arg0: i32, %arg1: i32) -> (i32, i32) {
    %c0_i32 = arith.constant 0 : i32
    %c0_i32_0 = arith.constant 0 : i32
    %c0_i32_1 = arith.constant 0 : i32
    return %c0_i32, %c0_i32_0 : i32, i32
  }
  func.func @transform_4(%arg0: i32, %arg1: i32) -> (i32, i32) {
    %c0_i32 = arith.constant 0 : i32
    %c0_i32_0 = arith.constant 0 : i32
    %c0_i32_1 = arith.constant 0 : i32
    return %c0_i32, %c0_i32_0 : i32, i32
  }
  func.func @transform_5(%arg0: i32, %arg1: i32) -> (i32, i32) {
    %c0_i32 = arith.constant 0 : i32
    %c0_i32_0 = arith.constant 0 : i32
    %c0_i32_1 = arith.constant 0 : i32
    return %c0_i32, %c0_i32_0 : i32, i32
  }
  func.func @transform_6(%arg0: i32, %arg1: i32) -> (i32, i32, i32) {
    %c0_i32 = arith.constant 0 : i32
    %c0_i32_0 = arith.constant 0 : i32
    return %arg0, %c0_i32, %arg1 : i32, i32, i32
  }
  func.func @transform_7(%arg0: i32, %arg1: i32) -> (i32, i32, i32) {
    %c0_i32 = arith.constant 0 : i32
    %c0_i32_0 = arith.constant 0 : i32
    return %arg0, %c0_i32, %arg1 : i32, i32, i32
  }
  func.func @transform_8(%arg0: i32, %arg1: i32) -> (i32, i32, i32) {
    %c0_i32 = arith.constant 0 : i32
    %c0_i32_0 = arith.constant 0 : i32
    return %arg0, %c0_i32, %arg1 : i32, i32, i32
  }
}

</mosaic_0001>

<llo_original>
// kernel: tpu_custom_call.1
$region0: #{tpu_custom_call.1}
  #allocation0 [shape = 'u32[]', space=smem, size = 0x4, offset = 0x4, fixed_abs, tag = 'smem constant byte address 0x4 - core index']
  #allocation1 [shape = 'u32[72,128]{1,0:T(1,128)}', space=vmem, size = 0x9000, scoped, tag = 'internal scratch']
  %s0 = inlined_call_operand.hbm [shape: f32[2,8,256], index: 0, kind: input, shape index: {}]
  %s1 = inlined_call_operand.hbm [shape: f32[2,8,256], index: 1, kind: input, shape index: {}]
  %s2 = inlined_call_operand.vmem [shape: f32[8,8], index: 2, kind: input, shape index: {}]
  %s3 = inlined_call_operand.vmem [shape: f32[8,1], index: 3, kind: input, shape index: {}]
  %s4 = inlined_call_operand.vmem [shape: f32[8,8], index: 4, kind: input, shape index: {}]
  %s5 = inlined_call_operand.vmem [shape: f32[8,1], index: 5, kind: input, shape index: {}]
  %s6 = inlined_call_operand.hbm [shape: f32[2,8,256], index: 6, kind: output, shape index: {0}]
  %s7 = inlined_call_operand.hbm [shape: f32[2,8,256], index: 7, kind: output, shape index: {1}]
  %s8 = inlined_call_operand.hbm [shape: f32[2,8,256], index: 8, kind: output, shape index: {2}]
  %9 = xla_tuple %s6, %s7, %s8
  %s10 = sld [smem:[#allocation0]]
  $region81: #{tpu_custom_call.1} parent=0
    _
  %s12 = ssub.s32 1, %s10
  %s13 = scalar_select 0, %s12, %s10
  $region1: #{tpu_custom_call.1} parent=0
    #allocation2 [shape = 'u8[16384]{0}', space=vmem, size = 0x4000, scoped, tag = 'input window, operand 0']
    #allocation3 [shape = 's32[2]{0}', space=sflag, size = 0x8, scoped, tag = 'scoped memory for tpu_custom_call.1']
    #allocation4 [shape = 's32[2]{0}', space=sflag, size = 0x8, scoped, tag = 'scoped memory for tpu_custom_call.1']
    #allocation5 [shape = 'u8[16384]{0}', space=vmem, size = 0x4000, scoped, tag = 'input window, operand 1']
    #allocation6 [shape = 's32[2]{0}', space=sflag, size = 0x8, scoped, tag = 'scoped memory for tpu_custom_call.1']
    #allocation7 [shape = 'u8[16384]{0}', space=vmem, size = 0x4000, scoped, tag = 'output window, operand 0']
    #allocation8 [shape = 'u8[16384]{0}', space=vmem, size = 0x4000, scoped, tag = 'output window, operand 1']
    #allocation9 [shape = 's32[2]{0}', space=sflag, size = 0x8, scoped, tag = 'scoped memory for tpu_custom_call.1']
    #allocation10 [shape = 'u8[16384]{0}', space=vmem, size = 0x4000, scoped, tag = 'output window, operand 2']
    %14 = vsyncpa [#allocation3], 0
    %s15 = scalar_lea.sflag [#allocation3], 1
    %16 = vsyncpa %s15, 0
    %17 = vsyncpa [#allocation6], 0
    %s18 = scalar_lea.sflag [#allocation6], 1
    %19 = vsyncpa %s18, 0
    %20 = vsyncpa [#allocation4], 0
    %s21 = scalar_lea.sflag [#allocation4], 1
    %22 = vsyncpa %s21, 0
    %23 = vsyncpa [#allocation9], 0
    %s24 = scalar_lea.sflag [#allocation9], 1
    %25 = vsyncpa %s24, 0
    loop: start=0, step=1, limit=4
    $region2: #{tpu_custom_call.1} parent=1 // loop_pre_header
      _
    $region3: #{tpu_custom_call.1} parent=1 // loop_header
      %s27 = sphi 0, %s31
      %p28 = scmp.ge.s32.totalorder %s27, 4
      %s34 = sphi 0, %s46
      %s35 = sphi 0, %s42
      %s36 = sphi 0, %s34
      %s37 = sphi 0, %s35
      %s38 = sphi 0, %s36
      %s39 = sphi 0, %s37
      %s51 = sphi 0, %s53
      %s54 = sphi 0, %s51
      %s55 = sphi 0, %s54
      %s71 = sphi 0, %s55
      %s79 = sphi 0, %s81
      %s82 = sphi 0, %s79
      %s83 = sphi 0, %s82
      %s99 = sphi 0, %s83
      %s103 = sphi 0, %s103
      %s105 = sphi 0, %s103
      %s106 = sphi 0, %s105
      %s120 = sphi 0, %s106
      %s124 = sphi 0, %s124
      %s126 = sphi 0, %s124
      %s127 = sphi 0, %s126
      %s141 = sphi 0, %s127
      %s145 = sphi 0, %s145
      %s147 = sphi 0, %s145
      %s148 = sphi 0, %s147
      %s162 = sphi 0, %s148
      %s166 = sphi 0, %s166
      %s168 = sphi 0, %s166
      %s169 = sphi 0, %s168
      %s183 = sphi 0, %s169
      %s191 = sphi 0, %s193
      %s194 = sphi 0, %s191
      %s195 = sphi 0, %s194
      %s211 = sphi 0, %s195
      %s219 = sphi 0, %s221
      %s222 = sphi 0, %s219
      %s223 = sphi 0, %s222
      %s239 = sphi 0, %s223
      %s247 = sphi 0, %s249
      %s250 = sphi 0, %s247
      %s251 = sphi 0, %s250
      %s267 = sphi 0, %s251
    $region4: #{tpu_custom_call.1} parent=1 // loop_header_branch
      %30 = sbr.rel (%p28) target = $region8
    $region5: #{tpu_custom_call.1} parent=1 // loop_body
      %s32 = ssub.s32 %s27, 1
      %s33 = ssub.s32 %s27, 2
      %s40 = sadd.s32 1, %s35
      %p41 = scmp.ge.s32.totalorder %s40, 1
      %s42 = scalar_select %p41, 0, %s40
      %s43 = sadd.s32 1, %s34
      %s44 = scalar_select %p41, %s43, %s34
      %p45 = scmp.ge.s32.totalorder %s44, 2
      %s46 = scalar_select %p45, 0, %s44
      %s47 = ssub.s32 %s34, %s46
      %s48 = ssub.s32 %s35, %s42
      %s49 = sor.u32 %s47, %s48
      %p50 = scmp.eq.s32.totalorder %s49, 0
      %s52 = sadd.s32 %s51, 1
      %s53 = scalar_select %p50, %s51, %s52
      %p56 = pneg %p50
      %p57 = scmp.eq.s32.totalorder %s27, 1
      %p58 = por %p56, %p57
      %p59 = scmp.ne.s32.totalorder %s51, %s54
      %p60 = scmp.eq.s32.totalorder %s27, 0
      %p61 = por %p59, %p60
      %p62 = scmp.ne.s32.totalorder %s51, %s54
      %p63 = scmp.eq.s32.totalorder %s32, 1
      %p64 = por %p62, %p63
      %p65 = scmp.ne.s32.totalorder %s54, %s55
      %p66 = scmp.eq.s32.totalorder %s32, 0
      %p67 = por %p65, %p66
      %p68 = scmp.ne.s32.totalorder %s54, %s55
      %p69 = scmp.eq.s32.totalorder %s33, 1
      %p70 = por %p68, %p69
      %p72 = scmp.ne.s32.totalorder %s55, %s71
      %p73 = scmp.eq.s32.totalorder %s33, 0
      %p74 = por %p72, %p73
      %s75 = ssub.s32 %s34, %s46
      %s76 = ssub.s32 %s35, %s42
      %s77 = sor.u32 %s75, %s76
      %p78 = scmp.eq.s32.totalorder %s77, 0
      %s80 = sadd.s32 %s79, 1
      %s81 = scalar_select %p78, %s79, %s80
      %p84 = pneg %p78
      %p85 = scmp.eq.s32.totalorder %s27, 1
      %p86 = por %p84, %p85
      %p87 = scmp.ne.s32.totalorder %s79, %s82
      %p88 = scmp.eq.s32.totalorder %s27, 0
      %p89 = por %p87, %p88
      %p90 = scmp.ne.s32.totalorder %s79, %s82
      %p91 = scmp.eq.s32.totalorder %s32, 1
      %p92 = por %p90, %p91
      %p93 = scmp.ne.s32.totalorder %s82, %s83
      %p94 = scmp.eq.s32.totalorder %s32, 0
      %p95 = por %p93, %p94
      %p96 = scmp.ne.s32.totalorder %s82, %s83
      %p97 = scmp.eq.s32.totalorder %s33, 1
      %p98 = por %p96, %p97
      %p100 = scmp.ne.s32.totalorder %s83, %s99
      %p101 = scmp.eq.s32.totalorder %s33, 0
      %p102 = por %p100, %p101
      %s104 = sadd.s32 %s103, 1
      %p107 = scmp.eq.s32.totalorder %s27, 1
      %p108 = scmp.ne.s32.totalorder %s103, %s105
      %p109 = scmp.eq.s32.totalorder %s27, 0
      %p110 = por %p108, %p109
      %p111 = scmp.ne.s32.totalorder %s103, %s105
      %p112 = scmp.eq.s32.totalorder %s32, 1
      %p113 = por %p111, %p112
      %p114 = scmp.ne.s32.totalorder %s105, %s106
      %p115 = scmp.eq.s32.totalorder %s32, 0
      %p116 = por %p114, %p115
      %p117 = scmp.ne.s32.totalorder %s105, %s106
      %p118 = scmp.eq.s32.totalorder %s33, 1
      %p119 = por %p117, %p118
      %p121 = scmp.ne.s32.totalorder %s106, %s120
      %p122 = scmp.eq.s32.totalorder %s33, 0
      %p123 = por %p121, %p122
      %s125 = sadd.s32 %s124, 1
      %p128 = scmp.eq.s32.totalorder %s27, 1
      %p129 = scmp.ne.s32.totalorder %s124, %s126
      %p130 = scmp.eq.s32.totalorder %s27, 0
      %p131 = por %p129, %p130
      %p132 = scmp.ne.s32.totalorder %s124, %s126
      %p133 = scmp.eq.s32.totalorder %s32, 1
      %p134 = por %p132, %p133
      %p135 = scmp.ne.s32.totalorder %s126, %s127
      %p136 = scmp.eq.s32.totalorder %s32, 0
      %p137 = por %p135, %p136
      %p138 = scmp.ne.s32.totalorder %s126, %s127
      %p139 = scmp.eq.s32.totalorder %s33, 1
      %p140 = por %p138, %p139
      %p142 = scmp.ne.s32.totalorder %s127, %s141
      %p143 = scmp.eq.s32.totalorder %s33, 0
      %p144 = por %p142, %p143
      %s146 = sadd.s32 %s145, 1
      %p149 = scmp.eq.s32.totalorder %s27, 1
      %p150 = scmp.ne.s32.totalorder %s145, %s147
      %p151 = scmp.eq.s32.totalorder %s27, 0
      %p152 = por %p150, %p151
      %p153 = scmp.ne.s32.totalorder %s145, %s147
      %p154 = scmp.eq.s32.totalorder %s32, 1
      %p155 = por %p153, %p154
      %p156 = scmp.ne.s32.totalorder %s147, %s148
      %p157 = scmp.eq.s32.totalorder %s32, 0
      %p158 = por %p156, %p157
      %p159 = scmp.ne.s32.totalorder %s147, %s148
      %p160 = scmp.eq.s32.totalorder %s33, 1
      %p161 = por %p159, %p160
      %p163 = scmp.ne.s32.totalorder %s148, %s162
      %p164 = scmp.eq.s32.totalorder %s33, 0
      %p165 = por %p163, %p164
      %s167 = sadd.s32 %s166, 1
      %p170 = scmp.eq.s32.totalorder %s27, 1
      %p171 = scmp.ne.s32.totalorder %s166, %s168
      %p172 = scmp.eq.s32.totalorder %s27, 0
      %p173 = por %p171, %p172
      %p174 = scmp.ne.s32.totalorder %s166, %s168
      %p175 = scmp.eq.s32.totalorder %s32, 1
      %p176 = por %p174, %p175
      %p177 = scmp.ne.s32.totalorder %s168, %s169
      %p178 = scmp.eq.s32.totalorder %s32, 0
      %p179 = por %p177, %p178
      %p180 = scmp.ne.s32.totalorder %s168, %s169
      %p181 = scmp.eq.s32.totalorder %s33, 1
      %p182 = por %p180, %p181
      %p184 = scmp.ne.s32.totalorder %s169, %s183
      %p185 = scmp.eq.s32.totalorder %s33, 0
      %p186 = por %p184, %p185
      %s187 = ssub.s32 %s34, %s46
      %s188 = ssub.s32 %s35, %s42
      %s189 = sor.u32 %s187, %s188
      %p190 = scmp.eq.s32.totalorder %s189, 0
      %s192 = sadd.s32 %s191, 1
      %s193 = scalar_select %p190, %s191, %s192
      %p196 = pneg %p190
      %p197 = scmp.eq.s32.totalorder %s27, 1
      %p198 = por %p196, %p197
      %p199 = scmp.ne.s32.totalorder %s191, %s194
      %p200 = scmp.eq.s32.totalorder %s27, 0
      %p201 = por %p199, %p200
      %p202 = scmp.ne.s32.totalorder %s191, %s194
      %p203 = scmp.eq.s32.totalorder %s32, 1
      %p204 = por %p202, %p203
      %p205 = scmp.ne.s32.totalorder %s194, %s195
      %p206 = scmp.eq.s32.totalorder %s32, 0
      %p207 = por %p205, %p206
      %p208 = scmp.ne.s32.totalorder %s194, %s195
      %p209 = scmp.eq.s32.totalorder %s33, 1
      %p210 = por %p208, %p209
      %p212 = scmp.ne.s32.totalorder %s195, %s211
      %p213 = scmp.eq.s32.totalorder %s33, 0
      %p214 = por %p212, %p213
      %s215 = ssub.s32 %s34, %s46
      %s216 = ssub.s32 %s35, %s42
      %s217 = sor.u32 %s215, %s216
      %p218 = scmp.eq.s32.totalorder %s217, 0
      %s220 = sadd.s32 %s219, 1
      %s221 = scalar_select %p218, %s219, %s220
      %p224 = pneg %p218
      %p225 = scmp.eq.s32.totalorder %s27, 1
      %p226 = por %p224, %p225
      %p227 = scmp.ne.s32.totalorder %s219, %s222
      %p228 = scmp.eq.s32.totalorder %s27, 0
      %p229 = por %p227, %p228
      %p230 = scmp.ne.s32.totalorder %s219, %s222
      %p231 = scmp.eq.s32.totalorder %s32, 1
      %p232 = por %p230, %p231
      %p233 = scmp.ne.s32.totalorder %s222, %s223
      %p234 = scmp.eq.s32.totalorder %s32, 0
      %p235 = por %p233, %p234
      %p236 = scmp.ne.s32.totalorder %s222, %s223
      %p237 = scmp.eq.s32.totalorder %s33, 1
      %p238 = por %p236, %p237
      %p240 = scmp.ne.s32.totalorder %s223, %s239
      %p241 = scmp.eq.s32.totalorder %s33, 0
      %p242 = por %p240, %p241
      %s243 = ssub.s32 %s34, %s46
      %s244 = ssub.s32 %s35, %s42
      %s245 = sor.u32 %s243, %s244
      %p246 = scmp.eq.s32.totalorder %s245, 0
      %s248 = sadd.s32 %s247, 1
      %s249 = scalar_select %p246, %s247, %s248
      %p252 = pneg %p246
      %p253 = scmp.eq.s32.totalorder %s27, 1
      %p254 = por %p252, %p253
      %p255 = scmp.ne.s32.totalorder %s247, %s250
      %p256 = scmp.eq.s32.totalorder %s27, 0
      %p257 = por %p255, %p256
      %p258 = scmp.ne.s32.totalorder %s247, %s250
      %p259 = scmp.eq.s32.totalorder %s32, 1
      %p260 = por %p258, %p259
      %p261 = scmp.ne.s32.totalorder %s250, %s251
      %p262 = scmp.eq.s32.totalorder %s32, 0
      %p263 = por %p261, %p262
      %p264 = scmp.ne.s32.totalorder %s250, %s251
      %p265 = scmp.eq.s32.totalorder %s33, 1
      %p266 = por %p264, %p265
      %p268 = scmp.ne.s32.totalorder %s251, %s267
      %p269 = scmp.eq.s32.totalorder %s33, 0
      %p270 = por %p268, %p269
      %p271 = scmp.le.s32.totalorder 1, %s27
      %p272 = scmp.lt.s32.totalorder %s27, 3
      %p273 = pnand %p271, %p272
      %p274 = pneg %p273
      // Predicated region
      $region9: #{tpu_custom_call.1} parent=5 // pred_check
        _
      $region10: #{tpu_custom_call.1} parent=5 // pred_check_branch
        %276 = sbr.rel (%p273) target = $region12
      $region11: #{tpu_custom_call.1} parent=5 // pred_region
        %s277 = ssub.s32 %s27, 1
        // Predicated region
        $region13: #{tpu_custom_call.1} parent=11 // pred_check
          %p278 = pneg %p116
        $region14: #{tpu_custom_call.1} parent=11 // pred_check_branch
          %280 = sbr.rel (%p278) target = $region16
        $region15: #{tpu_custom_call.1} parent=11 // pred_region
          _
        $region16: #{tpu_custom_call.1} parent=11 // pred_fallthru
          _
        // Predicated region
        $region17: #{tpu_custom_call.1} parent=11 // pred_check
          %p281 = pneg %p137
        $region18: #{tpu_custom_call.1} parent=11 // pred_check_branch
          %283 = sbr.rel (%p281) target = $region20
        $region19: #{tpu_custom_call.1} parent=11 // pred_region
          _
        $region20: #{tpu_custom_call.1} parent=11 // pred_fallthru
          _
        // Predicated region
        $region21: #{tpu_custom_call.1} parent=11 // pred_check
          %p284 = pneg %p158
        $region22: #{tpu_custom_call.1} parent=11 // pred_check_branch
          %286 = sbr.rel (%p284) target = $region24
        $region23: #{tpu_custom_call.1} parent=11 // pred_region
          _
        $region24: #{tpu_custom_call.1} parent=11 // pred_fallthru
          _
        // Predicated region
        $region25: #{tpu_custom_call.1} parent=11 // pred_check
          %p287 = pneg %p179
        $region26: #{tpu_custom_call.1} parent=11 // pred_check_branch
          %289 = sbr.rel (%p287) target = $region28
        $region27: #{tpu_custom_call.1} parent=11 // pred_region
          _
        $region28: #{tpu_custom_call.1} parent=11 // pred_fallthru
          _
      $region12: #{tpu_custom_call.1} parent=5 // pred_fallthru
        _
      %p290 = scmp.lt.s32.totalorder %s27, 2
      // Predicated region
      $region29: #{tpu_custom_call.1} parent=5 // pred_check
        %p291 = pneg %p290
      $region30: #{tpu_custom_call.1} parent=5 // pred_check_branch
        %293 = sbr.rel (%p291) target = $region32
      $region31: #{tpu_custom_call.1} parent=5 // pred_region
        // Predicated region
        $region33: #{tpu_custom_call.1} parent=31 // pred_check
          %p294 = pneg %p61
        $region34: #{tpu_custom_call.1} parent=31 // pred_check_branch
          %296 = sbr.rel (%p294) target = $region36
        $region35: #{tpu_custom_call.1} parent=31 // pred_region
          %s297 = sand.u32 %s51, 1
          %s298 = scalar_lea.sflag [#allocation3], %s297
          %s299 = sand.u32 %s51, 1
          %s300 = smul.addr %s299, 16
          %s301 = scalar_lea.vmem [#allocation2], %s300
          %s302 = smul.u32 2, %s35
          %304 = vsyncadd %s298, 0
          %s305 = smul.addr %s34, 2
          %s306 = sadd.s32 %s302, %s305
          %s307 = smul.addr %s306, 8
          %s308 = scalar_lea.hbm %s0, %s307
          %s310 = sshll.u32 %s308, 4
          %s311 = int_to_ptr.hbm [resolvable:$true] %s310
          %s312 = sshll.u32 %s301, 4
          %s313 = int_to_ptr.vmem [resolvable:$true] %s312
          %315 = dma.hbm_to_vmem [thread:$0]  %s311, 256, %s313, %s298
        $region36: #{tpu_custom_call.1} parent=31 // pred_fallthru
          _
        // Predicated region
        $region37: #{tpu_custom_call.1} parent=31 // pred_check
          %p316 = pneg %p89
        $region38: #{tpu_custom_call.1} parent=31 // pred_check_branch
          %318 = sbr.rel (%p316) target = $region40
        $region39: #{tpu_custom_call.1} parent=31 // pred_region
          %s319 = sand.u32 %s79, 1
          %s320 = scalar_lea.sflag [#allocation6], %s319
          %s321 = sand.u32 %s79, 1
          %s322 = smul.addr %s321, 16
          %s323 = scalar_lea.vmem [#allocation5], %s322
          %s324 = smul.u32 2, %s35
          %326 = vsyncadd %s320, 0
          %s327 = smul.addr %s34, 2
          %s328 = sadd.s32 %s324, %s327
          %s329 = smul.addr %s328, 8
          %s330 = scalar_lea.hbm %s1, %s329
          %s332 = sshll.u32 %s330, 4
          %s333 = int_to_ptr.hbm [resolvable:$true] %s332
          %s334 = sshll.u32 %s323, 4
          %s335 = int_to_ptr.vmem [resolvable:$true] %s334
          %337 = dma.hbm_to_vmem [thread:$0]  %s333, 256, %s335, %s320
        $region40: #{tpu_custom_call.1} parent=31 // pred_fallthru
          _
      $region32: #{tpu_custom_call.1} parent=5 // pred_fallthru
        _
      %p338 = scmp.le.s32.totalorder 1, %s27
      %p339 = scmp.lt.s32.totalorder %s27, 3
      %p340 = pnand %p338, %p339
      %p341 = pneg %p340
      // Predicated region
      $region41: #{tpu_custom_call.1} parent=5 // pred_check
        _
      $region42: #{tpu_custom_call.1} parent=5 // pred_check_branch
        %343 = sbr.rel (%p340) target = $region44
      $region43: #{tpu_custom_call.1} parent=5 // pred_region
        %s344 = ssub.s32 %s27, 1
        %s345 = sand.u32 %s54, 1
        %s346 = scalar_lea.sflag [#allocation3], %s345
        %s347 = sand.u32 %s54, 1
        %s348 = smul.addr %s347, 16
        %s349 = scalar_lea.vmem [#allocation2], %s348
        // Predicated region
        $region45: #{tpu_custom_call.1} parent=43 // pred_check
          %p350 = pneg %p67
        $region46: #{tpu_custom_call.1} parent=43 // pred_check_branch
          %352 = sbr.rel (%p350) target = $region48
        $region47: #{tpu_custom_call.1} parent=43 // pred_region
          %354 = dma.done %s346, 256
        $region48: #{tpu_custom_call.1} parent=43 // pred_fallthru
          _
        %s355 = sand.u32 %s82, 1
        %s356 = scalar_lea.sflag [#allocation6], %s355
        %s357 = sand.u32 %s82, 1
        %s358 = smul.addr %s357, 16
        %s359 = scalar_lea.vmem [#allocation5], %s358
        // Predicated region
        $region49: #{tpu_custom_call.1} parent=43 // pred_check
          %p360 = pneg %p95
        $region50: #{tpu_custom_call.1} parent=43 // pred_check_branch
          %362 = sbr.rel (%p360) target = $region52
        $region51: #{tpu_custom_call.1} parent=43 // pred_region
          %364 = dma.done %s356, 256
        $region52: #{tpu_custom_call.1} parent=43 // pred_fallthru
          _
        %s365 = sand.u32 %s54, 1
        %s366 = scalar_lea.sflag [#allocation3], %s365
        %s367 = sand.u32 %s54, 1
        %s368 = smul.addr %s367, 16
        %s369 = scalar_lea.vmem [#allocation2], %s368
        %p370 = pneg %p67
        %p371 = pneg %p64
        %s372 = sand.u32 %s82, 1
        %s373 = scalar_lea.sflag [#allocation6], %s372
        %s374 = sand.u32 %s82, 1
        %s375 = smul.addr %s374, 16
        %s376 = scalar_lea.vmem [#allocation5], %s375
        %p377 = pneg %p95
        %p378 = pneg %p92
        %p379 = pneg %p116
        %p380 = pneg %p113
        %p381 = pneg %p137
        %p382 = pneg %p134
        %p383 = pneg %p158
        %p384 = pneg %p155
        %p385 = pneg %p179
        %p386 = pneg %p176
        %p387 = pneg %p207
        %p388 = pneg %p204
        %s389 = sand.u32 %s194, 1
        %s390 = scalar_lea.sflag [#allocation4], %s389
        %s391 = sand.u32 %s194, 1
        %s392 = smul.addr %s391, 16
        %s393 = scalar_lea.vmem [#allocation7], %s392
        %p394 = pneg %p235
        %p395 = pneg %p232
        %s396 = sand.u32 %s32, 1
        %s397 = scalar_lea.sflag [#allocation9], %s396
        %s398 = sand.u32 %s222, 1
        %s399 = smul.addr %s398, 16
        %s400 = scalar_lea.vmem [#allocation8], %s399
        %p401 = pneg %p263
        %p402 = pneg %p260
        %s403 = sand.u32 %s32, 1
        %s404 = scalar_lea.sflag [#allocation9], %s403
        %s405 = sand.u32 %s250, 1
        %s406 = smul.addr %s405, 16
        %s407 = scalar_lea.vmem [#allocation10], %s406
        %s408 = smul.u32 2, %s37
        %s409 = smul.u32 2, %s37
        %s410 = smul.u32 2, %s37
        %s411 = smul.u32 2, %s37
        %s412 = smul.u32 2, %s37
        %v413 = vld [vmem:[%s349] sm:$0xff]
        %v414 = vld [vmem:[%s349 + $0x8] sm:$0xff]
        %v415 = vld [vmem:[%s359] sm:$0xff]
        %v416 = vld [vmem:[%s359 + $0x8] sm:$0xff]
        %v417 = vld [vmem:[%s2] sm:$0xff]
        %v418 = vld [vmem:[%s3] sm:$0xff]
        %v419 = vld [vmem:[%s4] sm:$0xff]
        %v420 = vld [vmem:[%s5] sm:$0xff]
        %422 = vset.pattern.permute.xlu0 0
        %423 = vperm.xlu0 %422, %v418
        %v424 = vpop.permute.xlu0 %423
        %vm426 = vcmask 64512
        %v428 = vsel %vm426, %v417, 0
        %430 = vmatpush.msra.mxu0 0.0
        %431 = vmatpush.msra.mxu0 0.0
        %432 = vmatpush.msra.mxu0 0.0
        %433 = vmatpush.msra.mxu0 0.0
        %434 = vmatpush.msra.mxu0 0.0
        %435 = vmatpush.msra.mxu0 0.0
        %436 = vmatpush.msra.mxu0 0.0
        %437 = vmatpush.msra.mxu0 0.0
        %438 = vmatpush.msra.mxu0 0.0
        %439 = vmatpush.msra.mxu0 0.0
        %440 = vmatpush.msra.mxu0 0.0
        %441 = vmatpush.msra.mxu0 0.0
        %442 = vmatpush.msra.mxu0 0.0
        %443 = vmatpush.msra.mxu0 0.0
        %444 = vmatpush.msra.mxu0 0.0
        %445 = vmatpush.msra.mxu0 %v413
        %446 = vmatmul.f32.gmra.mxu0 %v428
        %v447 = vpop.f32.mrf.mxu0
        %v448 = vadd.f32 %v424, %v447
        %449 = vdwg.mxu0
        %450 = vmatpush.msra.mxu0 0.0
        %451 = vmatpush.msra.mxu0 0.0
        %452 = vmatpush.msra.mxu0 0.0
        %453 = vmatpush.msra.mxu0 0.0
        %454 = vmatpush.msra.mxu0 0.0
        %455 = vmatpush.msra.mxu0 0.0
        %456 = vmatpush.msra.mxu0 0.0
        %457 = vmatpush.msra.mxu0 0.0
        %458 = vmatpush.msra.mxu0 0.0
        %459 = vmatpush.msra.mxu0 0.0
        %460 = vmatpush.msra.mxu0 0.0
        %461 = vmatpush.msra.mxu0 0.0
        %462 = vmatpush.msra.mxu0 0.0
        %463 = vmatpush.msra.mxu0 0.0
        %464 = vmatpush.msra.mxu0 0.0
        %465 = vmatpush.msra.mxu0 %v414
        %466 = vmatmul.f32.gmra.mxu0 %v428
        %v467 = vpop.f32.mrf.mxu0
        %v468 = vadd.f32 %v424, %v467
        %469 = vdwg.mxu0
        %v470 = vmax.f32 %v448, 0.0
        %v471 = vmax.f32 %v468, 0.0
        %472 = vmatpush.msra.mxu0 0.0
        %473 = vmatpush.msra.mxu0 0.0
        %474 = vmatpush.msra.mxu0 0.0
        %475 = vmatpush.msra.mxu0 0.0
        %476 = vmatpush.msra.mxu0 0.0
        %477 = vmatpush.msra.mxu0 0.0
        %478 = vmatpush.msra.mxu0 0.0
        %479 = vmatpush.msra.mxu0 0.0
        %480 = vmatpush.msra.mxu0 0.0
        %481 = vmatpush.msra.mxu0 0.0
        %482 = vmatpush.msra.mxu0 0.0
        %483 = vmatpush.msra.mxu0 0.0
        %484 = vmatpush.msra.mxu0 0.0
        %485 = vmatpush.msra.mxu0 0.0
        %486 = vmatpush.msra.mxu0 0.0
        %487 = vmatpush.msra.mxu0 %v415
        %488 = vmatmul.f32.gmra.mxu0 %v428
        %v489 = vpop.f32.mrf.mxu0
        %v490 = vadd.f32 %v424, %v489
        %491 = vdwg.mxu0
        %492 = vmatpush.msra.mxu0 0.0
        %493 = vmatpush.msra.mxu0 0.0
        %494 = vmatpush.msra.mxu0 0.0
        %495 = vmatpush.msra.mxu0 0.0
        %496 = vmatpush.msra.mxu0 0.0
        %497 = vmatpush.msra.mxu0 0.0
        %498 = vmatpush.msra.mxu0 0.0
        %499 = vmatpush.msra.mxu0 0.0
        %500 = vmatpush.msra.mxu0 0.0
        %501 = vmatpush.msra.mxu0 0.0
        %502 = vmatpush.msra.mxu0 0.0
        %503 = vmatpush.msra.mxu0 0.0
        %504 = vmatpush.msra.mxu0 0.0
        %505 = vmatpush.msra.mxu0 0.0
        %506 = vmatpush.msra.mxu0 0.0
        %507 = vmatpush.msra.mxu0 %v416
        %508 = vmatmul.f32.gmra.mxu0 %v428
        %v509 = vpop.f32.mrf.mxu0
        %v510 = vadd.f32 %v424, %v509
        %511 = vdwg.mxu0
        %v512 = vmax.f32 %v490, 0.0
        %v513 = vmax.f32 %v510, 0.0
        %v514 = vadd.f32 %v470, %v512
        %v515 = vadd.f32 %v471, %v513
        %517 = vset.pattern.permute.xlu0 0
        %518 = vperm.xlu0 %517, %v420
        %v519 = vpop.permute.xlu0 %518
        %v522 = vsel %vm426, %v419, 0
        %524 = vmatpush.msra.mxu0 0.0
        %525 = vmatpush.msra.mxu0 0.0
        %526 = vmatpush.msra.mxu0 0.0
        %527 = vmatpush.msra.mxu0 0.0
        %528 = vmatpush.msra.mxu0 0.0
        %529 = vmatpush.msra.mxu0 0.0
        %530 = vmatpush.msra.mxu0 0.0
        %531 = vmatpush.msra.mxu0 0.0
        %532 = vmatpush.msra.mxu0 0.0
        %533 = vmatpush.msra.mxu0 0.0
        %534 = vmatpush.msra.mxu0 0.0
        %535 = vmatpush.msra.mxu0 0.0
        %536 = vmatpush.msra.mxu0 0.0
        %537 = vmatpush.msra.mxu0 0.0
        %538 = vmatpush.msra.mxu0 0.0
        %539 = vmatpush.msra.mxu0 %v514
        %540 = vmatmul.f32.gmra.mxu0 %v522
        %v541 = vpop.f32.mrf.mxu0
        %v542 = vadd.f32 %v519, %v541
        %543 = vdwg.mxu0
        %544 = vmatpush.msra.mxu0 0.0
        %545 = vmatpush.msra.mxu0 0.0
        %546 = vmatpush.msra.mxu0 0.0
        %547 = vmatpush.msra.mxu0 0.0
        %548 = vmatpush.msra.mxu0 0.0
        %549 = vmatpush.msra.mxu0 0.0
        %550 = vmatpush.msra.mxu0 0.0
        %551 = vmatpush.msra.mxu0 0.0
        %552 = vmatpush.msra.mxu0 0.0
        %553 = vmatpush.msra.mxu0 0.0
        %554 = vmatpush.msra.mxu0 0.0
        %555 = vmatpush.msra.mxu0 0.0
        %556 = vmatpush.msra.mxu0 0.0
        %557 = vmatpush.msra.mxu0 0.0
        %558 = vmatpush.msra.mxu0 0.0
        %559 = vmatpush.msra.mxu0 %v515
        %560 = vmatmul.f32.gmra.mxu0 %v522
        %v561 = vpop.f32.mrf.mxu0
        %v562 = vadd.f32 %v519, %v561
        %563 = vdwg.mxu0
        %v564 = vmax.f32 %v542, 0.0
        %v565 = vmax.f32 %v562, 0.0
        %566 = vst [vmem:[%s393] sm:$0xff] %v564
        %567 = vst [vmem:[%s393 + $0x8] sm:$0xff] %v565
        %568 = vst [vmem:[%s400] sm:$0xff] %v470
        %569 = vst [vmem:[%s400 + $0x8] sm:$0xff] %v471
        %570 = vst [vmem:[%s407] sm:$0xff] %v512
        %571 = vst [vmem:[%s407 + $0x8] sm:$0xff] %v513
        %s572 = sand.u32 %s194, 1
        %s573 = scalar_lea.sflag [#allocation4], %s572
        %s574 = sand.u32 %s194, 1
        %s575 = smul.addr %s574, 16
        %s576 = scalar_lea.vmem [#allocation7], %s575
        %s577 = sand.u32 %s32, 1
        %s578 = scalar_lea.sflag [#allocation9], %s577
        %s579 = sand.u32 %s222, 1
        %s580 = smul.addr %s579, 16
        %s581 = scalar_lea.vmem [#allocation8], %s580
        %s582 = sand.u32 %s32, 1
        %s583 = scalar_lea.sflag [#allocation9], %s582
        %s584 = sand.u32 %s250, 1
        %s585 = smul.addr %s584, 16
        %s586 = scalar_lea.vmem [#allocation10], %s585
        // Predicated region
        $region53: #{tpu_custom_call.1} parent=43 // pred_check
          %p587 = pneg %p204
        $region54: #{tpu_custom_call.1} parent=43 // pred_check_branch
          %589 = sbr.rel (%p587) target = $region56
        $region55: #{tpu_custom_call.1} parent=43 // pred_region
          %s590 = smul.u32 2, %s37
          %592 = vsyncadd %s573, 0
          %s593 = smul.addr %s36, 2
          %s594 = sadd.s32 %s590, %s593
          %s595 = smul.addr %s594, 8
          %s596 = scalar_lea.hbm %s6, %s595
          %s598 = sshll.u32 %s576, 4
          %s599 = int_to_ptr.vmem [resolvable:$true] %s598
          %s600 = sshll.u32 %s596, 4
          %s601 = int_to_ptr.hbm [resolvable:$true] %s600
          %603 = dma.vmem_to_hbm [thread:$0]  %s599, 256, %s601, %s573
        $region56: #{tpu_custom_call.1} parent=43 // pred_fallthru
          _
        // Predicated region
        $region57: #{tpu_custom_call.1} parent=43 // pred_check
          %p604 = pneg %p232
        $region58: #{tpu_custom_call.1} parent=43 // pred_check_branch
          %606 = sbr.rel (%p604) target = $region60
        $region59: #{tpu_custom_call.1} parent=43 // pred_region
          %s607 = smul.u32 2, %s37
          %609 = vsyncadd %s578, 0
          %s610 = smul.addr %s36, 2
          %s611 = sadd.s32 %s607, %s610
          %s612 = smul.addr %s611, 8
          %s613 = scalar_lea.hbm %s7, %s612
          %s615 = sshll.u32 %s581, 4
          %s616 = int_to_ptr.vmem [resolvable:$true] %s615
          %s617 = sshll.u32 %s613, 4
          %s618 = int_to_ptr.hbm [resolvable:$true] %s617
          %620 = dma.vmem_to_hbm [thread:$0]  %s616, 256, %s618, %s578
        $region60: #{tpu_custom_call.1} parent=43 // pred_fallthru
          _
        // Predicated region
        $region61: #{tpu_custom_call.1} parent=43 // pred_check
          %p621 = pneg %p260
        $region62: #{tpu_custom_call.1} parent=43 // pred_check_branch
          %623 = sbr.rel (%p621) target = $region64
        $region63: #{tpu_custom_call.1} parent=43 // pred_region
          %s624 = smul.u32 2, %s37
          %626 = vsyncadd %s583, 0
          %s627 = smul.addr %s36, 2
          %s628 = sadd.s32 %s624, %s627
          %s629 = smul.addr %s628, 8
          %s630 = scalar_lea.hbm %s8, %s629
          %s632 = sshll.u32 %s586, 4
          %s633 = int_to_ptr.vmem [resolvable:$true] %s632
          %s634 = sshll.u32 %s630, 4
          %s635 = int_to_ptr.hbm [resolvable:$true] %s634
          %637 = dma.vmem_to_hbm [thread:$0]  %s633, 256, %s635, %s583
        $region64: #{tpu_custom_call.1} parent=43 // pred_fallthru
          _
      $region44: #{tpu_custom_call.1} parent=5 // pred_fallthru
        _
      %p638 = scmp.le.s32.totalorder 2, %s27
      // Predicated region
      $region65: #{tpu_custom_call.1} parent=5 // pred_check
        %p639 = pneg %p638
      $region66: #{tpu_custom_call.1} parent=5 // pred_check_branch
        %641 = sbr.rel (%p639) target = $region68
      $region67: #{tpu_custom_call.1} parent=5 // pred_region
        %s642 = ssub.s32 %s27, 2
        // Predicated region
        $region69: #{tpu_custom_call.1} parent=67 // pred_check
          %p643 = pneg %p210
        $region70: #{tpu_custom_call.1} parent=67 // pred_check_branch
          %645 = sbr.rel (%p643) target = $region72
        $region71: #{tpu_custom_call.1} parent=67 // pred_region
          %s646 = sand.u32 %s195, 1
          %s647 = scalar_lea.sflag [#allocation4], %s646
          %s648 = sand.u32 %s195, 1
          %s649 = smul.addr %s648, 16
          %s650 = scalar_lea.vmem [#allocation7], %s649
          %652 = dma.done %s647, 256
        $region72: #{tpu_custom_call.1} parent=67 // pred_fallthru
          _
        // Predicated region
        $region73: #{tpu_custom_call.1} parent=67 // pred_check
          %p653 = pneg %p238
        $region74: #{tpu_custom_call.1} parent=67 // pred_check_branch
          %655 = sbr.rel (%p653) target = $region76
        $region75: #{tpu_custom_call.1} parent=67 // pred_region
          %s656 = sand.u32 %s33, 1
          %s657 = scalar_lea.sflag [#allocation9], %s656
          %s658 = sand.u32 %s223, 1
          %s659 = smul.addr %s658, 16
          %s660 = scalar_lea.vmem [#allocation8], %s659
          %662 = dma.done %s657, 256
        $region76: #{tpu_custom_call.1} parent=67 // pred_fallthru
          _
        // Predicated region
        $region77: #{tpu_custom_call.1} parent=67 // pred_check
          %p663 = pneg %p266
        $region78: #{tpu_custom_call.1} parent=67 // pred_check_branch
          %665 = sbr.rel (%p663) target = $region80
        $region79: #{tpu_custom_call.1} parent=67 // pred_region
          %s666 = sand.u32 %s33, 1
          %s667 = scalar_lea.sflag [#allocation9], %s666
          %s668 = sand.u32 %s251, 1
          %s669 = smul.addr %s668, 16
          %s670 = scalar_lea.vmem [#allocation10], %s669
          %672 = dma.done %s667, 256
        $region80: #{tpu_custom_call.1} parent=67 // pred_fallthru
          _
      $region68: #{tpu_custom_call.1} parent=5 // pred_fallthru
        _
    $region6: #{tpu_custom_call.1} parent=1 // loop_footer
      %s31 = sadd.s32 1, %s27
    $region7: #{tpu_custom_call.1} parent=1 // loop_footer_branch
      %26 = sbr.rel target = $region3
    $region8: #{tpu_custom_call.1} parent=1 // loop_exit
      _
    %673 = vsyncpa [#allocation3], 1
    %s674 = scalar_lea.sflag [#allocation3], 1
    %675 = vsyncpa %s674, 1
    %676 = vsyncpa [#allocation6], 1
    %s677 = scalar_lea.sflag [#allocation6], 1
    %678 = vsyncpa %s677, 1
    %679 = vsyncpa [#allocation4], 1
    %s680 = scalar_lea.sflag [#allocation4], 1
    %681 = vsyncpa %s680, 1
    %682 = vsyncpa [#allocation9], 1
    %s683 = scalar_lea.sflag [#allocation9], 1
    %684 = vsyncpa %s683, 1

</llo_original>
